<compile_context>
chip_gen: v7x
topology: tpu7x:2x2x1
jax: 0.10.0
libtpu: 0.0.40
codegen_flags: <defaults>
</compile_context>

<pallas_src>
import functools

import jax
import jax.numpy as jnp
from jax.experimental import pallas as pl
from jax.experimental.pallas import tpu as pltpu


IN_FEATURES = 28 * 28          # 784, fixed by the module
HIDDEN = (120, 84)             # inner_layers=[120, 84]
OUT_FEATURES = 10
LANE = 128                     # pad every layer's output dim to the lane width
_DEFAULT_BATCH_TILE = 1024     # multiple of 256 (v6e/v7x MXU M) and of 128 (v5e)
_VMEM_LIMIT_BYTES = 48 * 1024 * 1024   # > v5e's 16 MiB default scoped limit, < v7x's 64 MiB physical


def _round_up(x, m):
    return (x + m - 1) // m * m


def _gelu_tanh(x):
    # tanh-approximate GELU: the tanh lands on the EUP slot and the remaining mul/add
    # work runs on the bf16 VPU path (v6e/v7x).
    # TODO(synk): torch.nn.functional.gelu defaults to the exact erf form; the tanh
    # approximation deviates by <~3e-3, well inside the bf16 tolerance used here.
    c = jnp.asarray(0.7978845608028654, x.dtype)     # sqrt(2/pi)
    k = jnp.asarray(0.044715, x.dtype)
    return 0.5 * x * (1.0 + jnp.tanh(c * (x + k * x * x * x)))


def _mlp_kernel(x_ref, w1_ref, b1_ref, w2_ref, b2_ref, w3_ref, b3_ref, o_ref,
                *, compute_dtype):
    # x_ref: (TB, 784) f32; w*: (in, 128) bf16; b*: (1, 128) f32; o_ref: (TB, 128) bf16
    x = x_ref[...].astype(compute_dtype)             # on-chip f32 -> bf16 cast (no HBM round-trip)

    h1 = jnp.dot(x, w1_ref[...], preferred_element_type=jnp.float32) + b1_ref[...]
    h1 = _gelu_tanh(h1.astype(compute_dtype))        # padded cols are exactly 0 -> stay 0

    h2 = jnp.dot(h1, w2_ref[...], preferred_element_type=jnp.float32) + b2_ref[...]
    h2 = _gelu_tanh(h2.astype(compute_dtype))

    out = jnp.dot(h2, w3_ref[...], preferred_element_type=jnp.float32) + b3_ref[...]
    o_ref[...] = out.astype(o_ref.dtype)             # lane-dense 128-wide bf16 store


def _prepare_params(params, compute_dtype):
    """Zero-pad every layer's output dim (and next layer's input dim) to LANE=128.

    Weights are cast to the compute dtype (bf16); biases stay f32 (added after the
    f32-accumulated matmul).  Padding rows/columns are exactly zero, so the first
    OUT_FEATURES columns of the result are unchanged.
    """
    (w1, b1), (w2, b2), (w3, b3) = params
    d1p = _round_up(HIDDEN[0], LANE)       # 128
    d2p = _round_up(HIDDEN[1], LANE)       # 128
    d3p = _round_up(OUT_FEATURES, LANE)    # 128

    w1p = jnp.pad(w1, ((0, 0), (0, d1p - w1.shape[1]))).astype(compute_dtype)
    w2p = jnp.pad(w2, ((0, d1p - w2.shape[0]), (0, d2p - w2.shape[1]))).astype(compute_dtype)
    w3p = jnp.pad(w3, ((0, d2p - w3.shape[0]), (0, d3p - w3.shape[1]))).astype(compute_dtype)

    b1p = jnp.pad(b1, ((0, 0), (0, d1p - b1.shape[1]))).astype(jnp.float32)
    b2p = jnp.pad(b2, ((0, 0), (0, d2p - b2.shape[1]))).astype(jnp.float32)
    b3p = jnp.pad(b3, ((0, 0), (0, d3p - b3.shape[1]))).astype(jnp.float32)

    return (w1p, b1p, w2p, b2p, w3p, b3p), (d1p, d2p, d3p)


@functools.partial(jax.jit, static_argnames=("batch_tile", "compute_dtype"))
def net_forward(x_nchw, params, *, batch_tile=None, compute_dtype=jnp.bfloat16):
    """Forward pass of Net. x_nchw: (B, 1, 28, 28) float32.  Returns (B, 10) f32."""
    B = x_nchw.shape[0]
    x = x_nchw.reshape(B, -1)                        # flatten(input, 1); stays f32 (free bitcast)
    assert x.shape[1] == IN_FEATURES, "input must flatten to 784 features"

    (w1p, b1p, w2p, b2p, w3p, b3p), (d1p, d2p, d3p) = _prepare_params(params, compute_dtype)
    d0 = IN_FEATURES

    if batch_tile is not None:
        tile = max(8, _round_up(int(batch_tile), 8))
    else:
        # Large tile to amortize the ~0.35 us per-grid-step overhead, but keep >= 2
        # grid steps for large batches (v7x has 2 TensorCores; "parallel" only shards
        # with >= 2 steps) and never exceed the batch.
        tile = _DEFAULT_BATCH_TILE
        tile = min(tile, max(256, _round_up(pl.cdiv(B, 2), 256)))
        tile = min(tile, max(8, (B // 8) * 8)) if B >= 8 else 8
    grid = (pl.cdiv(B, tile),)                       # partial tail block; no wrapper-side pad

    # Weights/biases are small -> full-array constant blocks, resident across the grid.
    in_specs = [
        pl.BlockSpec((tile, d0), lambda i: (i, 0)),
        pl.BlockSpec((d0, d1p), lambda i: (0, 0)),
        pl.BlockSpec((1, d1p), lambda i: (0, 0)),
        pl.BlockSpec((d1p, d2p), lambda i: (0, 0)),
        pl.BlockSpec((1, d2p), lambda i: (0, 0)),
        pl.BlockSpec((d2p, d3p), lambda i: (0, 0)),
        pl.BlockSpec((1, d3p), lambda i: (0, 0)),
    ]
    out_specs = pl.BlockSpec((tile, d3p), lambda i: (i, 0))

    kernel = functools.partial(_mlp_kernel, compute_dtype=compute_dtype)
    out_padded = pl.pallas_call(
        kernel,
        out_shape=jax.ShapeDtypeStruct((B, d3p), compute_dtype),   # bf16 writeback
        grid_spec=pl.GridSpec(grid=grid, in_specs=in_specs, out_specs=out_specs),
        compiler_params=pltpu.CompilerParams(
            dimension_semantics=("parallel",),
            vmem_limit_bytes=_VMEM_LIMIT_BYTES,
        ),
    )(x, w1p, b1p, w2p, b2p, w3p, b3p)

    return out_padded[:, :OUT_FEATURES].astype(jnp.float32)


def init_params(key):
    """Deterministic init mimicking torch.nn.Linear's U(-1/sqrt(in), 1/sqrt(in)).

    Weights are stored transposed as (in, out); biases as (1, out).  (Unpadded, f32;
    padding/casting for the kernel happens in net_forward.)
    """
    dims = (IN_FEATURES,) + HIDDEN + (OUT_FEATURES,)
    params = []
    for din, dout in zip(dims[:-1], dims[1:]):
        key, kw, kb = jax.random.split(key, 3)
        bound = 1.0 / jnp.sqrt(float(din))
        w = jax.random.uniform(kw, (din, dout), jnp.float32, -bound, bound)
        b = jax.random.uniform(kb, (1, dout), jnp.float32, -bound, bound)
        params.append((w, b))
    return params


def _reference_forward(x_nchw, params):
    # Pure-JAX f32 reference with the exact (erf) GELU, matching torch's default.
    x = x_nchw.reshape(x_nchw.shape[0], -1)
    (w1, b1), (w2, b2), (w3, b3) = params
    h = jax.nn.gelu(x @ w1 + b1, approximate=False)
    h = jax.nn.gelu(h @ w2 + b2, approximate=False)
    return h @ w3 + b3


if __name__ == "__main__":
    key = jax.random.PRNGKey(0)
    kx, kp = jax.random.split(key)

    # Small test shape; B deliberately NOT a multiple of the tile so the partial
    # tail block (masked writeback) path is exercised.
    B = 40
    x = jax.random.normal(kx, (B, 1, 28, 28), jnp.float32)   # NCHW, MNIST-like
    params = init_params(kp)

    out = net_forward(x, params, batch_tile=16)              # grid = (cdiv(40,16),) = (3,)
    out = jax.block_until_ready(out)

    out_default = net_forward(x, params)                     # default (auto) tile path
    out_default = jax.block_until_ready(out_default)

    ref = _reference_forward(x, params)                      # f32 / exact-erf reference
    assert out.shape == (B, OUT_FEATURES)
    assert out_default.shape == (B, OUT_FEATURES)
    # bf16 activations/weights + tanh-GELU with f32 accumulation -> loosened tolerance.
    max_err = float(jnp.max(jnp.abs(out - ref)))
    assert jnp.allclose(out, ref, atol=7.5e-2, rtol=7.5e-2), (
        f"mismatch vs reference (max abs err {max_err})")
    max_err_d = float(jnp.max(jnp.abs(out_default - ref)))
    assert jnp.allclose(out_default, ref, atol=7.5e-2, rtol=7.5e-2), (
        f"mismatch vs reference on default tile path (max abs err {max_err_d})")

    print("KERNEL_OK")
</pallas_src>

<mosaic_0001>
module attributes {stable_mosaic.version = 11 : i64} {
  func.func @_mlp_kernel(%arg0: i32, %arg1: memref<16x784xf32, #tpu.memory_space<vmem>>, %arg2: memref<784x128xbf16, #tpu.memory_space<vmem>>, %arg3: memref<1x128xf32, #tpu.memory_space<vmem>>, %arg4: memref<128x128xbf16, #tpu.memory_space<vmem>>, %arg5: memref<1x128xf32, #tpu.memory_space<vmem>>, %arg6: memref<128x128xbf16, #tpu.memory_space<vmem>>, %arg7: memref<1x128xf32, #tpu.memory_space<vmem>>, %arg8: memref<16x128xbf16, #tpu.memory_space<vmem>>) attributes {dimension_semantics = [#tpu.dimension_semantics<parallel>], iteration_bounds = array<i64: 3>, scalar_prefetch = 0 : i64, scratch_operands = 0 : i64, tpu.core_type = #tpu.core_type<tc>, window_params = [{transform_indices = @transform_0, window_bounds = array<i64: 16, 784>}, {pipeline_mode = #tpu.pipeline_mode<synchronous>, transform_indices = @transform_1, window_bounds = array<i64: 784, 128>}, {pipeline_mode = #tpu.pipeline_mode<synchronous>, transform_indices = @transform_2, window_bounds = array<i64: 1, 128>}, {pipeline_mode = #tpu.pipeline_mode<synchronous>, transform_indices = @transform_3, window_bounds = array<i64: 128, 128>}, {pipeline_mode = #tpu.pipeline_mode<synchronous>, transform_indices = @transform_4, window_bounds = array<i64: 1, 128>}, {pipeline_mode = #tpu.pipeline_mode<synchronous>, transform_indices = @transform_5, window_bounds = array<i64: 128, 128>}, {pipeline_mode = #tpu.pipeline_mode<synchronous>, transform_indices = @transform_6, window_bounds = array<i64: 1, 128>}, {transform_indices = @transform_7, window_bounds = array<i64: 16, 128>}]} {
    %c0 = arith.constant 0 : index
    %c0_0 = arith.constant 0 : index
    %0 = vector.load %arg1[%c0, %c0_0] : memref<16x784xf32, #tpu.memory_space<vmem>>, vector<16x784xf32>
    %1 = arith.truncf %0 : vector<16x784xf32> to vector<16x784xbf16>
    %c0_1 = arith.constant 0 : index
    %c0_2 = arith.constant 0 : index
    %2 = vector.load %arg2[%c0_1, %c0_2] : memref<784x128xbf16, #tpu.memory_space<vmem>>, vector<784x128xbf16>
    %cst = arith.constant dense<0.000000e+00> : vector<16x128xf32>
    %3 = tpu.matmul %1, %2, %cst {dimension_numbers = #tpu.dot_dimension_numbers<[1], [0], [0], [1], [0, 0, 1, 1], [], []>} : vector<16x784xbf16>, vector<784x128xbf16>, vector<16x128xf32> -> vector<16x128xf32>
    %c0_3 = arith.constant 0 : index
    %c0_4 = arith.constant 0 : index
    %4 = vector.load %arg3[%c0_3, %c0_4] : memref<1x128xf32, #tpu.memory_space<vmem>>, vector<1x128xf32>
    %5 = vector.broadcast %4 : vector<1x128xf32> to vector<16x128xf32>
    %6 = arith.addf %3, %5 : vector<16x128xf32>
    %7 = arith.truncf %6 : vector<16x128xf32> to vector<16x128xbf16>
    %cst_5 = arith.constant 5.000000e-01 : bf16
    %8 = vector.broadcast %cst_5 : bf16 to vector<16x128xbf16>
    %9 = arith.mulf %8, %7 : vector<16x128xbf16>
    %cst_6 = arith.constant 4.467770e-02 : bf16
    %10 = vector.broadcast %cst_6 : bf16 to vector<16x128xbf16>
    %11 = arith.mulf %10, %7 : vector<16x128xbf16>
    %12 = arith.mulf %11, %7 : vector<16x128xbf16>
    %13 = arith.mulf %12, %7 : vector<16x128xbf16>
    %14 = arith.addf %7, %13 : vector<16x128xbf16>
    %cst_7 = arith.constant 7.968750e-01 : bf16
    %15 = vector.broadcast %cst_7 : bf16 to vector<16x128xbf16>
    %16 = arith.mulf %15, %14 : vector<16x128xbf16>
    %17 = math.tanh %16 : vector<16x128xbf16>
    %cst_8 = arith.constant 1.000000e+00 : bf16
    %18 = vector.broadcast %cst_8 : bf16 to vector<16x128xbf16>
    %19 = arith.addf %18, %17 : vector<16x128xbf16>
    %20 = arith.mulf %9, %19 : vector<16x128xbf16>
    %c0_9 = arith.constant 0 : index
    %c0_10 = arith.constant 0 : index
    %21 = vector.load %arg4[%c0_9, %c0_10] : memref<128x128xbf16, #tpu.memory_space<vmem>>, vector<128x128xbf16>
    %cst_11 = arith.constant dense<0.000000e+00> : vector<16x128xf32>
    %22 = tpu.matmul %20, %21, %cst_11 {dimension_numbers = #tpu.dot_dimension_numbers<[1], [0], [0], [1], [0, 0, 1, 1], [], []>} : vector<16x128xbf16>, vector<128x128xbf16>, vector<16x128xf32> -> vector<16x128xf32>
    %c0_12 = arith.constant 0 : index
    %c0_13 = arith.constant 0 : index
    %23 = vector.load %arg5[%c0_12, %c0_13] : memref<1x128xf32, #tpu.memory_space<vmem>>, vector<1x128xf32>
    %24 = vector.broadcast %23 : vector<1x128xf32> to vector<16x128xf32>
    %25 = arith.addf %22, %24 : vector<16x128xf32>
    %26 = arith.truncf %25 : vector<16x128xf32> to vector<16x128xbf16>
    %cst_14 = arith.constant 5.000000e-01 : bf16
    %27 = vector.broadcast %cst_14 : bf16 to vector<16x128xbf16>
    %28 = arith.mulf %27, %26 : vector<16x128xbf16>
    %cst_15 = arith.constant 4.467770e-02 : bf16
    %29 = vector.broadcast %cst_15 : bf16 to vector<16x128xbf16>
    %30 = arith.mulf %29, %26 : vector<16x128xbf16>
    %31 = arith.mulf %30, %26 : vector<16x128xbf16>
    %32 = arith.mulf %31, %26 : vector<16x128xbf16>
    %33 = arith.addf %26, %32 : vector<16x128xbf16>
    %cst_16 = arith.constant 7.968750e-01 : bf16
    %34 = vector.broadcast %cst_16 : bf16 to vector<16x128xbf16>
    %35 = arith.mulf %34, %33 : vector<16x128xbf16>
    %36 = math.tanh %35 : vector<16x128xbf16>
    %cst_17 = arith.constant 1.000000e+00 : bf16
    %37 = vector.broadcast %cst_17 : bf16 to vector<16x128xbf16>
    %38 = arith.addf %37, %36 : vector<16x128xbf16>
    %39 = arith.mulf %28, %38 : vector<16x128xbf16>
    %c0_18 = arith.constant 0 : index
    %c0_19 = arith.constant 0 : index
    %40 = vector.load %arg6[%c0_18, %c0_19] : memref<128x128xbf16, #tpu.memory_space<vmem>>, vector<128x128xbf16>
    %cst_20 = arith.constant dense<0.000000e+00> : vector<16x128xf32>
    %41 = tpu.matmul %39, %40, %cst_20 {dimension_numbers = #tpu.dot_dimension_numbers<[1], [0], [0], [1], [0, 0, 1, 1], [], []>} : vector<16x128xbf16>, vector<128x128xbf16>, vector<16x128xf32> -> vector<16x128xf32>
    %c0_21 = arith.constant 0 : index
    %c0_22 = arith.constant 0 : index
    %42 = vector.load %arg7[%c0_21, %c0_22] : memref<1x128xf32, #tpu.memory_space<vmem>>, vector<1x128xf32>
    %43 = vector.broadcast %42 : vector<1x128xf32> to vector<16x128xf32>
    %44 = arith.addf %41, %43 : vector<16x128xf32>
    %45 = arith.truncf %44 : vector<16x128xf32> to vector<16x128xbf16>
    %c0_23 = arith.constant 0 : index
    %c0_24 = arith.constant 0 : index
    %46 = vector.load %arg8[%c0_23, %c0_24] : memref<16x128xbf16, #tpu.memory_space<vmem>>, vector<16x128xbf16>
    tpu.vector_store %arg8[%c0_23, %c0_24], %45 {strides = array<i32>} : memref<16x128xbf16, #tpu.memory_space<vmem>>, vector<16x128xbf16>,
    return
  }
  func.func @transform_0(%arg0: i32) -> (i32, i32) {
    %c0_i32 = arith.constant 0 : i32
    %c0_i32_0 = arith.constant 0 : i32
    return %arg0, %c0_i32 : i32, i32
  }
  func.func @transform_1(%arg0: i32) -> (i32, i32) {
    %c0_i32 = arith.constant 0 : i32
    %c0_i32_0 = arith.constant 0 : i32
    %c0_i32_1 = arith.constant 0 : i32
    return %c0_i32, %c0_i32_0 : i32, i32
  }
  func.func @transform_2(%arg0: i32) -> (i32, i32) {
    %c0_i32 = arith.constant 0 : i32
    %c0_i32_0 = arith.constant 0 : i32
    %c0_i32_1 = arith.constant 0 : i32
    return %c0_i32, %c0_i32_0 : i32, i32
  }
  func.func @transform_3(%arg0: i32) -> (i32, i32) {
    %c0_i32 = arith.constant 0 : i32
    %c0_i32_0 = arith.constant 0 : i32
    %c0_i32_1 = arith.constant 0 : i32
    return %c0_i32, %c0_i32_0 : i32, i32
  }
  func.func @transform_4(%arg0: i32) -> (i32, i32) {
    %c0_i32 = arith.constant 0 : i32
    %c0_i32_0 = arith.constant 0 : i32
    %c0_i32_1 = arith.constant 0 : i32
    return %c0_i32, %c0_i32_0 : i32, i32
  }
  func.func @transform_5(%arg0: i32) -> (i32, i32) {
    %c0_i32 = arith.constant 0 : i32
    %c0_i32_0 = arith.constant 0 : i32
    %c0_i32_1 = arith.constant 0 : i32
    return %c0_i32, %c0_i32_0 : i32, i32
  }
  func.func @transform_6(%arg0: i32) -> (i32, i32) {
    %c0_i32 = arith.constant 0 : i32
    %c0_i32_0 = arith.constant 0 : i32
    %c0_i32_1 = arith.constant 0 : i32
    return %c0_i32, %c0_i32_0 : i32, i32
  }
  func.func @transform_7(%arg0: i32) -> (i32, i32) {
    %c0_i32 = arith.constant 0 : i32
    %c0_i32_0 = arith.constant 0 : i32
    return %arg0, %c0_i32 : i32, i32
  }
}

</mosaic_0001>

<llo_original>
// kernel: net_forward.1
$region0: #{net_forward.1}
  #allocation0 [shape = 'u32[]', space=smem, size = 0x4, offset = 0x4, fixed_abs, tag = 'smem constant byte address 0x4 - core index']
  #allocation1 [shape = 'u32[144,128]{1,0:T(1,128)}', space=vmem, size = 0x12000, scoped, tag = 'internal scratch']
  %s0 = inlined_call_operand.vmem [shape: f32[40,784], index: 0, kind: input, shape index: {}]
  %s1 = inlined_call_operand.vmem [shape: bf16[784,128], index: 1, kind: input, shape index: {}]
  %s2 = inlined_call_operand.vmem [shape: f32[1,128], index: 2, kind: input, shape index: {}]
  %s3 = inlined_call_operand.vmem [shape: bf16[128,128], index: 3, kind: input, shape index: {}]
  %s4 = inlined_call_operand.vmem [shape: f32[1,128], index: 4, kind: input, shape index: {}]
  %s5 = inlined_call_operand.vmem [shape: bf16[128,128], index: 5, kind: input, shape index: {}]
  %s6 = inlined_call_operand.vmem [shape: f32[1,128], index: 6, kind: input, shape index: {}]
  %s7 = inlined_call_operand.vmem [shape: bf16[40,128], index: 7, kind: output, shape index: {}]
  %s8 = sld [smem:[#allocation0]]
  $region105: #{net_forward.1} parent=0
    _
  %s10 = ssub.s32 1, %s8
  %s11 = scalar_select 0, %s10, %s8
  $region1: #{net_forward.1} parent=0
    #allocation2 [shape = 'u8[8192]{0}', space=vmem, size = 0x2000, scoped, tag = 'output window, operand 0']
    loop: start=0, step=1, limit=5
    $region2: #{net_forward.1} parent=1 // loop_pre_header
      _
    $region3: #{net_forward.1} parent=1 // loop_header
      %s13 = sphi 0, %s17
      %p14 = scmp.ge.s32.totalorder %s13, 5
      %s23 = sphi 0, %s25
      %s26 = sphi 0, %s23
      %s27 = sphi 0, %s26
      %s43 = sphi 0, %s27
      %s47 = sphi 0, %s47
      %s49 = sphi 0, %s47
      %s50 = sphi 0, %s49
      %s64 = sphi 0, %s50
      %s68 = sphi 0, %s68
      %s70 = sphi 0, %s68
      %s71 = sphi 0, %s70
      %s85 = sphi 0, %s71
      %s89 = sphi 0, %s89
      %s91 = sphi 0, %s89
      %s92 = sphi 0, %s91
      %s106 = sphi 0, %s92
      %s110 = sphi 0, %s110
      %s112 = sphi 0, %s110
      %s113 = sphi 0, %s112
      %s127 = sphi 0, %s113
      %s131 = sphi 0, %s131
      %s133 = sphi 0, %s131
      %s134 = sphi 0, %s133
      %s148 = sphi 0, %s134
      %s152 = sphi 0, %s152
      %s154 = sphi 0, %s152
      %s155 = sphi 0, %s154
      %s169 = sphi 0, %s155
      %s175 = sphi 0, %s177
      %s178 = sphi 0, %s175
      %s179 = sphi 0, %s178
      %s195 = sphi 0, %s179
    $region4: #{net_forward.1} parent=1 // loop_header_branch
      %16 = sbr.rel (%p14) target = $region8
    $region5: #{net_forward.1} parent=1 // loop_body
      %s18 = ssub.s32 %s13, 1
      %s19 = ssub.s32 %s13, 2
      %s20 = sadd.s32 %s13, 1
      %s21 = ssub.s32 %s13, %s20
      %p22 = scmp.eq.s32.totalorder %s21, 0
      %s24 = sadd.s32 %s23, 1
      %s25 = scalar_select %p22, %s23, %s24
      %p28 = pneg %p22
      %p29 = scmp.eq.s32.totalorder %s13, 2
      %p30 = por %p28, %p29
      %p31 = scmp.ne.s32.totalorder %s23, %s26
      %p32 = scmp.eq.s32.totalorder %s13, 0
      %p33 = por %p31, %p32
      %p34 = scmp.ne.s32.totalorder %s23, %s26
      %p35 = scmp.eq.s32.totalorder %s18, 2
      %p36 = por %p34, %p35
      %p37 = scmp.ne.s32.totalorder %s26, %s27
      %p38 = scmp.eq.s32.totalorder %s18, 0
      %p39 = por %p37, %p38
      %p40 = scmp.ne.s32.totalorder %s26, %s27
      %p41 = scmp.eq.s32.totalorder %s19, 2
      %p42 = por %p40, %p41
      %p44 = scmp.ne.s32.totalorder %s27, %s43
      %p45 = scmp.eq.s32.totalorder %s19, 0
      %p46 = por %p44, %p45
      %s48 = sadd.s32 %s47, 1
      %p51 = scmp.eq.s32.totalorder %s13, 2
      %p52 = scmp.ne.s32.totalorder %s47, %s49
      %p53 = scmp.eq.s32.totalorder %s13, 0
      %p54 = por %p52, %p53
      %p55 = scmp.ne.s32.totalorder %s47, %s49
      %p56 = scmp.eq.s32.totalorder %s18, 2
      %p57 = por %p55, %p56
      %p58 = scmp.ne.s32.totalorder %s49, %s50
      %p59 = scmp.eq.s32.totalorder %s18, 0
      %p60 = por %p58, %p59
      %p61 = scmp.ne.s32.totalorder %s49, %s50
      %p62 = scmp.eq.s32.totalorder %s19, 2
      %p63 = por %p61, %p62
      %p65 = scmp.ne.s32.totalorder %s50, %s64
      %p66 = scmp.eq.s32.totalorder %s19, 0
      %p67 = por %p65, %p66
      %s69 = sadd.s32 %s68, 1
      %p72 = scmp.eq.s32.totalorder %s13, 2
      %p73 = scmp.ne.s32.totalorder %s68, %s70
      %p74 = scmp.eq.s32.totalorder %s13, 0
      %p75 = por %p73, %p74
      %p76 = scmp.ne.s32.totalorder %s68, %s70
      %p77 = scmp.eq.s32.totalorder %s18, 2
      %p78 = por %p76, %p77
      %p79 = scmp.ne.s32.totalorder %s70, %s71
      %p80 = scmp.eq.s32.totalorder %s18, 0
      %p81 = por %p79, %p80
      %p82 = scmp.ne.s32.totalorder %s70, %s71
      %p83 = scmp.eq.s32.totalorder %s19, 2
      %p84 = por %p82, %p83
      %p86 = scmp.ne.s32.totalorder %s71, %s85
      %p87 = scmp.eq.s32.totalorder %s19, 0
      %p88 = por %p86, %p87
      %s90 = sadd.s32 %s89, 1
      %p93 = scmp.eq.s32.totalorder %s13, 2
      %p94 = scmp.ne.s32.totalorder %s89, %s91
      %p95 = scmp.eq.s32.totalorder %s13, 0
      %p96 = por %p94, %p95
      %p97 = scmp.ne.s32.totalorder %s89, %s91
      %p98 = scmp.eq.s32.totalorder %s18, 2
      %p99 = por %p97, %p98
      %p100 = scmp.ne.s32.totalorder %s91, %s92
      %p101 = scmp.eq.s32.totalorder %s18, 0
      %p102 = por %p100, %p101
      %p103 = scmp.ne.s32.totalorder %s91, %s92
      %p104 = scmp.eq.s32.totalorder %s19, 2
      %p105 = por %p103, %p104
      %p107 = scmp.ne.s32.totalorder %s92, %s106
      %p108 = scmp.eq.s32.totalorder %s19, 0
      %p109 = por %p107, %p108
      %s111 = sadd.s32 %s110, 1
      %p114 = scmp.eq.s32.totalorder %s13, 2
      %p115 = scmp.ne.s32.totalorder %s110, %s112
      %p116 = scmp.eq.s32.totalorder %s13, 0
      %p117 = por %p115, %p116
      %p118 = scmp.ne.s32.totalorder %s110, %s112
      %p119 = scmp.eq.s32.totalorder %s18, 2
      %p120 = por %p118, %p119
      %p121 = scmp.ne.s32.totalorder %s112, %s113
      %p122 = scmp.eq.s32.totalorder %s18, 0
      %p123 = por %p121, %p122
      %p124 = scmp.ne.s32.totalorder %s112, %s113
      %p125 = scmp.eq.s32.totalorder %s19, 2
      %p126 = por %p124, %p125
      %p128 = scmp.ne.s32.totalorder %s113, %s127
      %p129 = scmp.eq.s32.totalorder %s19, 0
      %p130 = por %p128, %p129
      %s132 = sadd.s32 %s131, 1
      %p135 = scmp.eq.s32.totalorder %s13, 2
      %p136 = scmp.ne.s32.totalorder %s131, %s133
      %p137 = scmp.eq.s32.totalorder %s13, 0
      %p138 = por %p136, %p137
      %p139 = scmp.ne.s32.totalorder %s131, %s133
      %p140 = scmp.eq.s32.totalorder %s18, 2
      %p141 = por %p139, %p140
      %p142 = scmp.ne.s32.totalorder %s133, %s134
      %p143 = scmp.eq.s32.totalorder %s18, 0
      %p144 = por %p142, %p143
      %p145 = scmp.ne.s32.totalorder %s133, %s134
      %p146 = scmp.eq.s32.totalorder %s19, 2
      %p147 = por %p145, %p146
      %p149 = scmp.ne.s32.totalorder %s134, %s148
      %p150 = scmp.eq.s32.totalorder %s19, 0
      %p151 = por %p149, %p150
      %s153 = sadd.s32 %s152, 1
      %p156 = scmp.eq.s32.totalorder %s13, 2
      %p157 = scmp.ne.s32.totalorder %s152, %s154
      %p158 = scmp.eq.s32.totalorder %s13, 0
      %p159 = por %p157, %p158
      %p160 = scmp.ne.s32.totalorder %s152, %s154
      %p161 = scmp.eq.s32.totalorder %s18, 2
      %p162 = por %p160, %p161
      %p163 = scmp.ne.s32.totalorder %s154, %s155
      %p164 = scmp.eq.s32.totalorder %s18, 0
      %p165 = por %p163, %p164
      %p166 = scmp.ne.s32.totalorder %s154, %s155
      %p167 = scmp.eq.s32.totalorder %s19, 2
      %p168 = por %p166, %p167
      %p170 = scmp.ne.s32.totalorder %s155, %s169
      %p171 = scmp.eq.s32.totalorder %s19, 0
      %p172 = por %p170, %p171
      %s173 = ssub.s32 %s13, %s20
      %p174 = scmp.eq.s32.totalorder %s173, 0
      %s176 = sadd.s32 %s175, 1
      %s177 = scalar_select %p174, %s175, %s176
      %p180 = pneg %p174
      %p181 = scmp.eq.s32.totalorder %s13, 2
      %p182 = por %p180, %p181
      %p183 = scmp.ne.s32.totalorder %s175, %s178
      %p184 = scmp.eq.s32.totalorder %s13, 0
      %p185 = por %p183, %p184
      %p186 = scmp.ne.s32.totalorder %s175, %s178
      %p187 = scmp.eq.s32.totalorder %s18, 2
      %p188 = por %p186, %p187
      %p189 = scmp.ne.s32.totalorder %s178, %s179
      %p190 = scmp.eq.s32.totalorder %s18, 0
      %p191 = por %p189, %p190
      %p192 = scmp.ne.s32.totalorder %s178, %s179
      %p193 = scmp.eq.s32.totalorder %s19, 2
      %p194 = por %p192, %p193
      %p196 = scmp.ne.s32.totalorder %s179, %s195
      %p197 = scmp.eq.s32.totalorder %s19, 0
      %p198 = por %p196, %p197
      %p199 = scmp.le.s32.totalorder 1, %s13
      %p200 = scmp.lt.s32.totalorder %s13, 4
      %p201 = pnand %p199, %p200
      %p202 = pneg %p201
      // Predicated region
      $region9: #{net_forward.1} parent=5 // pred_check
        _
      $region10: #{net_forward.1} parent=5 // pred_check_branch
        %204 = sbr.rel (%p201) target = $region12
      $region11: #{net_forward.1} parent=5 // pred_region
        %s205 = ssub.s32 %s13, 1
        // Predicated region
        $region13: #{net_forward.1} parent=11 // pred_check
          %p206 = pneg %p60
        $region14: #{net_forward.1} parent=11 // pred_check_branch
          %208 = sbr.rel (%p206) target = $region16
        $region15: #{net_forward.1} parent=11 // pred_region
          _
        $region16: #{net_forward.1} parent=11 // pred_fallthru
          _
        // Predicated region
        $region17: #{net_forward.1} parent=11 // pred_check
          %p209 = pneg %p81
        $region18: #{net_forward.1} parent=11 // pred_check_branch
          %211 = sbr.rel (%p209) target = $region20
        $region19: #{net_forward.1} parent=11 // pred_region
          _
        $region20: #{net_forward.1} parent=11 // pred_fallthru
          _
        // Predicated region
        $region21: #{net_forward.1} parent=11 // pred_check
          %p212 = pneg %p102
        $region22: #{net_forward.1} parent=11 // pred_check_branch
          %214 = sbr.rel (%p212) target = $region24
        $region23: #{net_forward.1} parent=11 // pred_region
          _
        $region24: #{net_forward.1} parent=11 // pred_fallthru
          _
        // Predicated region
        $region25: #{net_forward.1} parent=11 // pred_check
          %p215 = pneg %p123
        $region26: #{net_forward.1} parent=11 // pred_check_branch
          %217 = sbr.rel (%p215) target = $region28
        $region27: #{net_forward.1} parent=11 // pred_region
          _
        $region28: #{net_forward.1} parent=11 // pred_fallthru
          _
        // Predicated region
        $region29: #{net_forward.1} parent=11 // pred_check
          %p218 = pneg %p144
        $region30: #{net_forward.1} parent=11 // pred_check_branch
          %220 = sbr.rel (%p218) target = $region32
        $region31: #{net_forward.1} parent=11 // pred_region
          _
        $region32: #{net_forward.1} parent=11 // pred_fallthru
          _
        // Predicated region
        $region33: #{net_forward.1} parent=11 // pred_check
          %p221 = pneg %p165
        $region34: #{net_forward.1} parent=11 // pred_check_branch
          %223 = sbr.rel (%p221) target = $region36
        $region35: #{net_forward.1} parent=11 // pred_region
          _
        $region36: #{net_forward.1} parent=11 // pred_fallthru
          _
      $region12: #{net_forward.1} parent=5 // pred_fallthru
        _
      %p224 = scmp.lt.s32.totalorder %s13, 3
      // Predicated region
      $region37: #{net_forward.1} parent=5 // pred_check
        %p225 = pneg %p224
      $region38: #{net_forward.1} parent=5 // pred_check_branch
        %227 = sbr.rel (%p225) target = $region40
      $region39: #{net_forward.1} parent=5 // pred_region
        // Predicated region
        $region41: #{net_forward.1} parent=39 // pred_check
          %p228 = pneg %p33
        $region42: #{net_forward.1} parent=39 // pred_check_branch
          %230 = sbr.rel (%p228) target = $region44
        $region43: #{net_forward.1} parent=39 // pred_region
          %s231 = smul.u32 2, %s13
          %s232 = ssub.s32 5, %s231
          %p233 = scmp.lt.s32.totalorder %s232, 2
          %s234 = scalar_select %p233, %s232, 2
          %s235 = smul.u32 128, %s234
          %s236 = smul.u32 %s235, 7
          %p237 = scmp.lt.s32.totalorder %s231, 4
          %s238 = scalar_select %p237, %s231, 4
          %s239 = smul.addr %s238, 7
          %s240 = smul.addr %s239, 8
          %s241 = scalar_lea.vmem %s0, %s240
          %s242 = smul.u32 2, %s13
          %s243 = ssub.s32 5, %s242
          %p244 = scmp.lt.s32.totalorder %s243, 2
          %s245 = scalar_select %p244, %s243, 2
          %s246 = smul.u32 128, %s245
          %s247 = smul.u32 %s246, 7
        $region44: #{net_forward.1} parent=39 // pred_fallthru
          _
      $region40: #{net_forward.1} parent=5 // pred_fallthru
        _
      %p248 = scmp.le.s32.totalorder 1, %s13
      %p249 = scmp.lt.s32.totalorder %s13, 4
      %p250 = pnand %p248, %p249
      %p251 = pneg %p250
      // Predicated region
      $region45: #{net_forward.1} parent=5 // pred_check
        _
      $region46: #{net_forward.1} parent=5 // pred_check_branch
        %253 = sbr.rel (%p250) target = $region48
      $region47: #{net_forward.1} parent=5 // pred_region
        %s254 = ssub.s32 %s13, 1
        %s255 = smul.u32 2, %s18
        %s256 = ssub.s32 5, %s255
        %p257 = scmp.lt.s32.totalorder %s256, 2
        %s258 = scalar_select %p257, %s256, 2
        %s259 = smul.u32 128, %s258
        %s260 = smul.u32 %s259, 7
        %p261 = scmp.lt.s32.totalorder %s255, 4
        %s262 = scalar_select %p261, %s255, 4
        %s263 = smul.addr %s262, 7
        %s264 = smul.addr %s263, 8
        %s265 = scalar_lea.vmem %s0, %s264
        %p266 = pneg %p39
        %p267 = pneg %p36
        %p268 = pneg %p60
        %p269 = pneg %p57
        %p270 = pneg %p81
        %p271 = pneg %p78
        %p272 = pneg %p102
        %p273 = pneg %p99
        %p274 = pneg %p123
        %p275 = pneg %p120
        %p276 = pneg %p144
        %p277 = pneg %p141
        %p278 = pneg %p165
        %p279 = pneg %p162
        %p280 = pneg %p191
        %p281 = pneg %p188
        %s282 = sand.u32 %s178, 1
        %s283 = sand.u32 %s178, 1
        %s284 = smul.addr %s283, 8
        %s285 = scalar_lea.vmem [#allocation2], %s284
        %s286 = smul.u32 2, %s18
        %s287 = ssub.s32 5, %s286
        %p288 = scmp.lt.s32.totalorder %s287, 2
        %s289 = scalar_select %p288, %s287, 2
        %s290 = smul.u32 128, %s289
        %s291 = smul.u32 %s290, 7
        %p292 = scmp.lt.s32.totalorder %s286, 4
        %s293 = scalar_select %p292, %s286, 4
        %s294 = smul.addr %s293, 7
        %s295 = smul.addr %s294, 8
        %s296 = scalar_lea.vmem %s0, %s295
        %s297 = smul.u32 2, %s18
        %s298 = ssub.s32 5, %s297
        %p299 = scmp.lt.s32.totalorder %s298, 2
        %s300 = scalar_select %p299, %s298, 2
        %s301 = smul.u32 128, %s300
        %s302 = smul.u32 %s301, 7
        %s303 = smul.u32 2, %s18
        %s304 = ssub.s32 5, %s303
        %p305 = scmp.lt.s32.totalorder %s304, 2
        %s306 = scalar_select %p305, %s304, 2
        %s307 = smul.u32 64, %s306
        %v313 = vld [vmem:[%s296] sm:$0xff]
        %v314 = vld [vmem:[%s296 + $0x8] sm:$0xff]
        %v315 = vld [vmem:[%s296 + $0x10] sm:$0xff]
        %v316 = vld [vmem:[%s296 + $0x18] sm:$0xff]
        %v317 = vld [vmem:[%s296 + $0x20] sm:$0xff]
        %v318 = vld [vmem:[%s296 + $0x28] sm:$0xff]
        %v319 = vld [vmem:[%s296 + $0x30] sm:$0xff]
        %v320 = vld [vmem:[%s296 + $0x38] sm:$0xff]
        %v321 = vld [vmem:[%s296 + $0x40] sm:$0xff]
        %v322 = vld [vmem:[%s296 + $0x48] sm:$0xff]
        %v323 = vld [vmem:[%s296 + $0x50] sm:$0xff]
        %v324 = vld [vmem:[%s296 + $0x58] sm:$0xff]
        %v325 = vld [vmem:[%s296 + $0x60] sm:$0xff]
        %v326 = vld [vmem:[%s296 + $0x68] sm:$0xff]
        %v327 = vpack.c.bf16 %v320, %v313
        %v328 = vpack.c.bf16 %v321, %v314
        %v329 = vpack.c.bf16 %v322, %v315
        %v330 = vpack.c.bf16 %v323, %v316
        %v331 = vpack.c.bf16 %v324, %v317
        %v332 = vpack.c.bf16 %v325, %v318
        %v333 = vpack.c.bf16 %v326, %v319
        %v334 = vld [vmem:[%s1] sm:$0xf]
        %v335 = vld [vmem:[%s1 + $0x4] sm:$0xf]
        %v336 = vld [vmem:[%s1 + $0x8] sm:$0xf]
        %v337 = vld [vmem:[%s1 + $0xc] sm:$0xf]
        %v338 = vld [vmem:[%s1 + $0x10] sm:$0xf]
        %v339 = vld [vmem:[%s1 + $0x14] sm:$0xf]
        %v340 = vld [vmem:[%s1 + $0x18] sm:$0xf]
        %v341 = vld [vmem:[%s1 + $0x1c] sm:$0xf]
        %v342 = vld [vmem:[%s1 + $0x20] sm:$0xf]
        %v343 = vld [vmem:[%s1 + $0x24] sm:$0xf]
        %v344 = vld [vmem:[%s1 + $0x28] sm:$0xf]
        %v345 = vld [vmem:[%s1 + $0x2c] sm:$0xf]
        %v346 = vld [vmem:[%s1 + $0x30] sm:$0xf]
        %v347 = vld [vmem:[%s1 + $0x34] sm:$0xf]
        %v348 = vld [vmem:[%s1 + $0x38] sm:$0xf]
        %v349 = vld [vmem:[%s1 + $0x3c] sm:$0xf]
        %v350 = vld [vmem:[%s1 + $0x40] sm:$0xf]
        %v351 = vld [vmem:[%s1 + $0x44] sm:$0xf]
        %v352 = vld [vmem:[%s1 + $0x48] sm:$0xf]
        %v353 = vld [vmem:[%s1 + $0x4c] sm:$0xf]
        %v354 = vld [vmem:[%s1 + $0x50] sm:$0xf]
        %v355 = vld [vmem:[%s1 + $0x54] sm:$0xf]
        %v356 = vld [vmem:[%s1 + $0x58] sm:$0xf]
        %v357 = vld [vmem:[%s1 + $0x5c] sm:$0xf]
        %v358 = vld [vmem:[%s1 + $0x60] sm:$0xf]
        %v359 = vld [vmem:[%s1 + $0x64] sm:$0xf]
        %v360 = vld [vmem:[%s1 + $0x68] sm:$0xf]
        %v361 = vld [vmem:[%s1 + $0x6c] sm:$0xf]
        %v362 = vld [vmem:[%s1 + $0x70] sm:$0xf]
        %v363 = vld [vmem:[%s1 + $0x74] sm:$0xf]
        %v364 = vld [vmem:[%s1 + $0x78] sm:$0xf]
        %v365 = vld [vmem:[%s1 + $0x7c] sm:$0xf]
        %v366 = vld [vmem:[%s1 + $0x80] sm:$0xf]
        %v367 = vld [vmem:[%s1 + $0x84] sm:$0xf]
        %v368 = vld [vmem:[%s1 + $0x88] sm:$0xf]
        %v369 = vld [vmem:[%s1 + $0x8c] sm:$0xf]
        %v370 = vld [vmem:[%s1 + $0x90] sm:$0xf]
        %v371 = vld [vmem:[%s1 + $0x94] sm:$0xf]
        %v372 = vld [vmem:[%s1 + $0x98] sm:$0xf]
        %v373 = vld [vmem:[%s1 + $0x9c] sm:$0xf]
        %v374 = vld [vmem:[%s1 + $0xa0] sm:$0xf]
        %v375 = vld [vmem:[%s1 + $0xa4] sm:$0xf]
        %v376 = vld [vmem:[%s1 + $0xa8] sm:$0xf]
        %v377 = vld [vmem:[%s1 + $0xac] sm:$0xf]
        %v378 = vld [vmem:[%s1 + $0xb0] sm:$0xf]
        %v379 = vld [vmem:[%s1 + $0xb4] sm:$0xf]
        %v380 = vld [vmem:[%s1 + $0xb8] sm:$0xf]
        %v381 = vld [vmem:[%s1 + $0xbc] sm:$0xf]
        %v382 = vld [vmem:[%s1 + $0xc0] sm:$0xf]
        %v383 = vld [vmem:[%s1 + $0xc4] sm:$0xf]
        %v384 = vld [vmem:[%s1 + $0xc8] sm:$0xf]
        %v385 = vld [vmem:[%s1 + $0xcc] sm:$0xf]
        %v386 = vld [vmem:[%s1 + $0xd0] sm:$0xf]
        %v387 = vld [vmem:[%s1 + $0xd4] sm:$0xf]
        %v388 = vld [vmem:[%s1 + $0xd8] sm:$0xf]
        %v389 = vld [vmem:[%s1 + $0xdc] sm:$0xf]
        %v390 = vld [vmem:[%s1 + $0xe0] sm:$0xf]
        %v391 = vld [vmem:[%s1 + $0xe4] sm:$0xf]
        %v392 = vld [vmem:[%s1 + $0xe8] sm:$0xf]
        %v393 = vld [vmem:[%s1 + $0xec] sm:$0xf]
        %v394 = vld [vmem:[%s1 + $0xf0] sm:$0xf]
        %v395 = vld [vmem:[%s1 + $0xf4] sm:$0xf]
        %v396 = vld [vmem:[%s1 + $0xf8] sm:$0xf]
        %v397 = vld [vmem:[%s1 + $0xfc] sm:$0xf]
        %v398 = vld [vmem:[%s1 + $0x100] sm:$0xf]
        %v399 = vld [vmem:[%s1 + $0x104] sm:$0xf]
        %v400 = vld [vmem:[%s1 + $0x108] sm:$0xf]
        %v401 = vld [vmem:[%s1 + $0x10c] sm:$0xf]
        %v402 = vld [vmem:[%s1 + $0x110] sm:$0xf]
        %v403 = vld [vmem:[%s1 + $0x114] sm:$0xf]
        %v404 = vld [vmem:[%s1 + $0x118] sm:$0xf]
        %v405 = vld [vmem:[%s1 + $0x11c] sm:$0xf]
        %v406 = vld [vmem:[%s1 + $0x120] sm:$0xf]
        %v407 = vld [vmem:[%s1 + $0x124] sm:$0xf]
        %v408 = vld [vmem:[%s1 + $0x128] sm:$0xf]
        %v409 = vld [vmem:[%s1 + $0x12c] sm:$0xf]
        %v410 = vld [vmem:[%s1 + $0x130] sm:$0xf]
        %v411 = vld [vmem:[%s1 + $0x134] sm:$0xf]
        %v412 = vld [vmem:[%s1 + $0x138] sm:$0xf]
        %v413 = vld [vmem:[%s1 + $0x13c] sm:$0xf]
        %v414 = vld [vmem:[%s1 + $0x140] sm:$0xf]
        %v415 = vld [vmem:[%s1 + $0x144] sm:$0xf]
        %v416 = vld [vmem:[%s1 + $0x148] sm:$0xf]
        %v417 = vld [vmem:[%s1 + $0x14c] sm:$0xf]
        %v418 = vld [vmem:[%s1 + $0x150] sm:$0xf]
        %v419 = vld [vmem:[%s1 + $0x154] sm:$0xf]
        %v420 = vld [vmem:[%s1 + $0x158] sm:$0xf]
        %v421 = vld [vmem:[%s1 + $0x15c] sm:$0xf]
        %v422 = vld [vmem:[%s1 + $0x160] sm:$0xf]
        %v423 = vld [vmem:[%s1 + $0x164] sm:$0xf]
        %v424 = vld [vmem:[%s1 + $0x168] sm:$0xf]
        %v425 = vld [vmem:[%s1 + $0x16c] sm:$0xf]
        %v426 = vld [vmem:[%s1 + $0x170] sm:$0xf]
        %v427 = vld [vmem:[%s1 + $0x174] sm:$0xf]
        %v428 = vld [vmem:[%s1 + $0x178] sm:$0xf]
        %v429 = vld [vmem:[%s1 + $0x17c] sm:$0xf]
        %v430 = vld [vmem:[%s1 + $0x180] sm:$0xf]
        %v431 = vld [vmem:[%s1 + $0x184] sm:$0xf]
        %v432 = vld [vmem:[%s2] sm:$0x1]
        %v434 = vlaneseq
        %v435 = vshrl.u32 %v434, 7
        %v436 = vsub.s32 0, %v435
        %v437 = vrot.slane %v432, %v436
        %v537 = vunpack.c.l.b16 %v334
        %v538 = vunpack.c.l.b16 %v335
        %v539 = vunpack.c.l.b16 %v336
        %v540 = vunpack.c.l.b16 %v337
        %v541 = vunpack.c.l.b16 %v338
        %v542 = vunpack.c.l.b16 %v339
        %v543 = vunpack.c.l.b16 %v340
        %v544 = vunpack.c.l.b16 %v341
        %v545 = vunpack.c.l.b16 %v342
        %v546 = vunpack.c.l.b16 %v343
        %v547 = vunpack.c.l.b16 %v344
        %v548 = vunpack.c.l.b16 %v345
        %v549 = vunpack.c.l.b16 %v346
        %v550 = vunpack.c.l.b16 %v347
        %v551 = vunpack.c.l.b16 %v348
        %v552 = vunpack.c.l.b16 %v349
        %v553 = vunpack.c.l.b16 %v350
        %v554 = vunpack.c.l.b16 %v351
        %v555 = vunpack.c.l.b16 %v352
        %v556 = vunpack.c.l.b16 %v353
        %v557 = vunpack.c.l.b16 %v354
        %v558 = vunpack.c.l.b16 %v355
        %v559 = vunpack.c.l.b16 %v356
        %v560 = vunpack.c.l.b16 %v357
        %v561 = vunpack.c.l.b16 %v358
        %v562 = vunpack.c.l.b16 %v359
        %v563 = vunpack.c.l.b16 %v360
        %v564 = vunpack.c.l.b16 %v361
        %v565 = vunpack.c.l.b16 %v362
        %v566 = vunpack.c.l.b16 %v363
        %v567 = vunpack.c.l.b16 %v364
        %v568 = vunpack.c.l.b16 %v365
        %v569 = vunpack.c.l.b16 %v366
        %v570 = vunpack.c.l.b16 %v367
        %v571 = vunpack.c.l.b16 %v368
        %v572 = vunpack.c.l.b16 %v369
        %v573 = vunpack.c.l.b16 %v370
        %v574 = vunpack.c.l.b16 %v371
        %v575 = vunpack.c.l.b16 %v372
        %v576 = vunpack.c.l.b16 %v373
        %v577 = vunpack.c.l.b16 %v374
        %v578 = vunpack.c.l.b16 %v375
        %v579 = vunpack.c.l.b16 %v376
        %v580 = vunpack.c.l.b16 %v377
        %v581 = vunpack.c.l.b16 %v378
        %v582 = vunpack.c.l.b16 %v379
        %v583 = vunpack.c.l.b16 %v380
        %v584 = vunpack.c.l.b16 %v381
        %v585 = vunpack.c.l.b16 %v382
        %v586 = vunpack.c.l.b16 %v383
        %v587 = vunpack.c.l.b16 %v384
        %v588 = vunpack.c.l.b16 %v385
        %v589 = vunpack.c.l.b16 %v386
        %v590 = vunpack.c.l.b16 %v387
        %v591 = vunpack.c.l.b16 %v388
        %v592 = vunpack.c.l.b16 %v389
        %v593 = vunpack.c.l.b16 %v390
        %v594 = vunpack.c.l.b16 %v391
        %v595 = vunpack.c.l.b16 %v392
        %v596 = vunpack.c.l.b16 %v393
        %v597 = vunpack.c.l.b16 %v394
        %v598 = vunpack.c.l.b16 %v395
        %v599 = vunpack.c.l.b16 %v396
        %v600 = vunpack.c.l.b16 %v397
        %v601 = vunpack.c.l.b16 %v398
        %v602 = vunpack.c.l.b16 %v399
        %v603 = vunpack.c.l.b16 %v400
        %v604 = vunpack.c.l.b16 %v401
        %v605 = vunpack.c.l.b16 %v402
        %v606 = vunpack.c.l.b16 %v403
        %v607 = vunpack.c.l.b16 %v404
        %v608 = vunpack.c.l.b16 %v405
        %v609 = vunpack.c.l.b16 %v406
        %v610 = vunpack.c.l.b16 %v407
        %v611 = vunpack.c.l.b16 %v408
        %v612 = vunpack.c.l.b16 %v409
        %v613 = vunpack.c.l.b16 %v410
        %v614 = vunpack.c.l.b16 %v411
        %v615 = vunpack.c.l.b16 %v412
        %v616 = vunpack.c.l.b16 %v413
        %v617 = vunpack.c.l.b16 %v414
        %v618 = vunpack.c.l.b16 %v415
        %v619 = vunpack.c.l.b16 %v416
        %v620 = vunpack.c.l.b16 %v417
        %v621 = vunpack.c.l.b16 %v418
        %v622 = vunpack.c.l.b16 %v419
        %v623 = vunpack.c.l.b16 %v420
        %v624 = vunpack.c.l.b16 %v421
        %v625 = vunpack.c.l.b16 %v422
        %v626 = vunpack.c.l.b16 %v423
        %v627 = vunpack.c.l.b16 %v424
        %v628 = vunpack.c.l.b16 %v425
        %v629 = vunpack.c.l.b16 %v426
        %v630 = vunpack.c.l.b16 %v427
        %v631 = vunpack.c.l.b16 %v428
        %v632 = vunpack.c.l.b16 %v429
        %v633 = vunpack.c.l.b16 %v430
        %v634 = vunpack.c.l.b16 %v431
        %v635 = vpack.c.b16 %v538, %v537
        %v636 = vpack.c.b16 %v540, %v539
        %v637 = vpack.c.b16 %v542, %v541
        %v638 = vpack.c.b16 %v544, %v543
        %v639 = vpack.c.b16 %v546, %v545
        %v640 = vpack.c.b16 %v548, %v547
        %v641 = vpack.c.b16 %v550, %v549
        %v642 = vpack.c.b16 %v552, %v551
        %v643 = vpack.c.b16 %v554, %v553
        %v644 = vpack.c.b16 %v556, %v555
        %v645 = vpack.c.b16 %v558, %v557
        %v646 = vpack.c.b16 %v560, %v559
        %v647 = vpack.c.b16 %v562, %v561
        %v648 = vpack.c.b16 %v564, %v563
        %v649 = vpack.c.b16 %v566, %v565
        %v650 = vpack.c.b16 %v568, %v567
        %v651 = vpack.c.b16 %v570, %v569
        %v652 = vpack.c.b16 %v572, %v571
        %v653 = vpack.c.b16 %v574, %v573
        %v654 = vpack.c.b16 %v576, %v575
        %v655 = vpack.c.b16 %v578, %v577
        %v656 = vpack.c.b16 %v580, %v579
        %v657 = vpack.c.b16 %v582, %v581
        %v658 = vpack.c.b16 %v584, %v583
        %v659 = vpack.c.b16 %v586, %v585
        %v660 = vpack.c.b16 %v588, %v587
        %v661 = vpack.c.b16 %v590, %v589
        %v662 = vpack.c.b16 %v592, %v591
        %v663 = vpack.c.b16 %v594, %v593
        %v664 = vpack.c.b16 %v596, %v595
        %v665 = vpack.c.b16 %v598, %v597
        %v666 = vpack.c.b16 %v600, %v599
        %v667 = vpack.c.b16 %v602, %v601
        %v668 = vpack.c.b16 %v604, %v603
        %v669 = vpack.c.b16 %v606, %v605
        %v670 = vpack.c.b16 %v608, %v607
        %v671 = vpack.c.b16 %v610, %v609
        %v672 = vpack.c.b16 %v612, %v611
        %v673 = vpack.c.b16 %v614, %v613
        %v674 = vpack.c.b16 %v616, %v615
        %v675 = vpack.c.b16 %v618, %v617
        %v676 = vpack.c.b16 %v620, %v619
        %v677 = vpack.c.b16 %v622, %v621
        %v678 = vpack.c.b16 %v624, %v623
        %v679 = vpack.c.b16 %v626, %v625
        %v680 = vpack.c.b16 %v628, %v627
        %v681 = vpack.c.b16 %v630, %v629
        %v682 = vpack.c.b16 %v632, %v631
        %v683 = vpack.c.b16 %v634, %v633
        %vm733 = vcmask 130048
        %v735 = vsel %vm733, %v333, 0
        %737 = vmatprep.subr.bf16.mxu0 0
        %738 = vmatpush1.bf16.msra.mxu0 %v635
        %739 = vmatprep.subr.bf16.mxu0 0
        %740 = vmatpush1.bf16.msra.mxu0 %v636
        %741 = vmatprep.subr.bf16.mxu0 0
        %742 = vmatpush1.bf16.msra.mxu0 %v637
        %743 = vmatprep.subr.bf16.mxu0 0
        %744 = vmatpush1.bf16.msra.mxu0 %v638
        %745 = vmatprep.subr.bf16.mxu0 0
        %746 = vmatpush1.bf16.msra.mxu0 %v639
        %747 = vmatprep.subr.bf16.mxu0 0
        %748 = vmatpush1.bf16.msra.mxu0 %v640
        %749 = vmatprep.subr.bf16.mxu0 0
        %750 = vmatpush1.bf16.msra.mxu0 %v641
        %751 = vmatprep.subr.bf16.mxu0 0
        %752 = vmatpush1.bf16.msra.mxu0 %v642
        %753 = vmatprep.subr.bf16.mxu0 0
        %754 = vmatpush1.bf16.msra.mxu0 %v643
        %755 = vmatprep.subr.bf16.mxu0 0
        %756 = vmatpush1.bf16.msra.mxu0 %v644
        %757 = vmatprep.subr.bf16.mxu0 0
        %758 = vmatpush1.bf16.msra.mxu0 %v645
        %759 = vmatprep.subr.bf16.mxu0 0
        %760 = vmatpush1.bf16.msra.mxu0 %v646
        %761 = vmatprep.subr.bf16.mxu0 0
        %762 = vmatpush1.bf16.msra.mxu0 %v647
        %763 = vmatprep.subr.bf16.mxu0 0
        %764 = vmatpush1.bf16.msra.mxu0 %v648
        %765 = vmatprep.subr.bf16.mxu0 0
        %766 = vmatpush1.bf16.msra.mxu0 %v649
        %767 = vmatprep.subr.bf16.mxu0 0
        %768 = vmatpush1.bf16.msra.mxu0 %v650
        %769 = vmatprep.mubr.bf16.mxu0 %v328
        %770 = vmatmul.mubr.bf16.gmra.mrb[0].mxu0 %v327
        %v771 = vpop.f32.mrb[0].mxu0
        %v772 = vadd.f32 %v437, %v771
        %v773 = vpop.f32.mrb[0].mxu0
        %v774 = vpop.f32.mrb[0].mxu0
        %v775 = vadd.f32 %v437, %v774
        %v776 = vpop.f32.mrb[0].mxu0
        %777 = vdwg.mxu0
        %778 = vmatprep.subr.bf16.mxu0 0
        %779 = vmatpush1.bf16.msra.mxu0 %v651
        %780 = vmatprep.subr.bf16.mxu0 0
        %781 = vmatpush1.bf16.msra.mxu0 %v652
        %782 = vmatprep.subr.bf16.mxu0 0
        %783 = vmatpush1.bf16.msra.mxu0 %v653
        %784 = vmatprep.subr.bf16.mxu0 0
        %785 = vmatpush1.bf16.msra.mxu0 %v654
        %786 = vmatprep.subr.bf16.mxu0 0
        %787 = vmatpush1.bf16.msra.mxu0 %v655
        %788 = vmatprep.subr.bf16.mxu0 0
        %789 = vmatpush1.bf16.msra.mxu0 %v656
        %790 = vmatprep.subr.bf16.mxu0 0
        %791 = vmatpush1.bf16.msra.mxu0 %v657
        %792 = vmatprep.subr.bf16.mxu0 0
        %793 = vmatpush1.bf16.msra.mxu0 %v658
        %794 = vmatprep.subr.bf16.mxu0 0
        %795 = vmatpush1.bf16.msra.mxu0 %v659
        %796 = vmatprep.subr.bf16.mxu0 0
        %797 = vmatpush1.bf16.msra.mxu0 %v660
        %798 = vmatprep.subr.bf16.mxu0 0
        %799 = vmatpush1.bf16.msra.mxu0 %v661
        %800 = vmatprep.subr.bf16.mxu0 0
        %801 = vmatpush1.bf16.msra.mxu0 %v662
        %802 = vmatprep.subr.bf16.mxu0 0
        %803 = vmatpush1.bf16.msra.mxu0 %v663
        %804 = vmatprep.subr.bf16.mxu0 0
        %805 = vmatpush1.bf16.msra.mxu0 %v664
        %806 = vmatprep.subr.bf16.mxu0 0
        %807 = vmatpush1.bf16.msra.mxu0 %v665
        %808 = vmatprep.subr.bf16.mxu0 0
        %809 = vmatpush1.bf16.msra.mxu0 %v666
        %810 = vmatprep.mubr.bf16.mxu0 %v330
        %811 = vmatmul.mubr.bf16.gmra.mrb[0].mxu0 %v329
        %v812 = vpop.f32.mrb[0].mxu0
        %v813 = vadd.f32 %v772, %v812
        %v814 = vpop.f32.mrb[0].mxu0
        %v815 = vpop.f32.mrb[0].mxu0
        %v816 = vadd.f32 %v775, %v815
        %v817 = vpop.f32.mrb[0].mxu0
        %818 = vdwg.mxu0
        %819 = vmatprep.subr.bf16.mxu0 0
        %820 = vmatpush1.bf16.msra.mxu0 %v667
        %821 = vmatprep.subr.bf16.mxu0 0
        %822 = vmatpush1.bf16.msra.mxu0 %v668
        %823 = vmatprep.subr.bf16.mxu0 0
        %824 = vmatpush1.bf16.msra.mxu0 %v669
        %825 = vmatprep.subr.bf16.mxu0 0
        %826 = vmatpush1.bf16.msra.mxu0 %v670
        %827 = vmatprep.subr.bf16.mxu0 0
        %828 = vmatpush1.bf16.msra.mxu0 %v671
        %829 = vmatprep.subr.bf16.mxu0 0
        %830 = vmatpush1.bf16.msra.mxu0 %v672
        %831 = vmatprep.subr.bf16.mxu0 0
        %832 = vmatpush1.bf16.msra.mxu0 %v673
        %833 = vmatprep.subr.bf16.mxu0 0
        %834 = vmatpush1.bf16.msra.mxu0 %v674
        %835 = vmatprep.subr.bf16.mxu0 0
        %836 = vmatpush1.bf16.msra.mxu0 %v675
        %837 = vmatprep.subr.bf16.mxu0 0
        %838 = vmatpush1.bf16.msra.mxu0 %v676
        %839 = vmatprep.subr.bf16.mxu0 0
        %840 = vmatpush1.bf16.msra.mxu0 %v677
        %841 = vmatprep.subr.bf16.mxu0 0
        %842 = vmatpush1.bf16.msra.mxu0 %v678
        %843 = vmatprep.subr.bf16.mxu0 0
        %844 = vmatpush1.bf16.msra.mxu0 %v679
        %845 = vmatprep.subr.bf16.mxu0 0
        %846 = vmatpush1.bf16.msra.mxu0 %v680
        %847 = vmatprep.subr.bf16.mxu0 0
        %848 = vmatpush1.bf16.msra.mxu0 %v681
        %849 = vmatprep.subr.bf16.mxu0 0
        %850 = vmatpush1.bf16.msra.mxu0 %v682
        %851 = vmatprep.mubr.bf16.mxu0 %v332
        %852 = vmatmul.mubr.bf16.gmra.mrb[0].mxu0 %v331
        %v853 = vpop.f32.mrb[0].mxu0
        %v854 = vadd.f32 %v813, %v853
        %v855 = vpop.f32.mrb[0].mxu0
        %v856 = vpop.f32.mrb[0].mxu0
        %v857 = vadd.f32 %v816, %v856
        %v858 = vpop.f32.mrb[0].mxu0
        %859 = vdwg.mxu0
        %860 = vmatprep.subr.bf16.mxu0 0
        %861 = vmatpush1.bf16.msra.mxu0 %v683
        %862 = vmatprep.subr.bf16.mxu0 0
        %863 = vmatpush1.bf16.msra.mxu0 0
        %864 = vmatprep.subr.bf16.mxu0 0
        %865 = vmatpush1.bf16.msra.mxu0 0
        %866 = vmatprep.subr.bf16.mxu0 0
        %867 = vmatpush1.bf16.msra.mxu0 0
        %868 = vmatprep.subr.bf16.mxu0 0
        %869 = vmatpush1.bf16.msra.mxu0 0
        %870 = vmatprep.subr.bf16.mxu0 0
        %871 = vmatpush1.bf16.msra.mxu0 0
        %872 = vmatprep.subr.bf16.mxu0 0
        %873 = vmatpush1.bf16.msra.mxu0 0
        %874 = vmatprep.subr.bf16.mxu0 0
        %875 = vmatpush1.bf16.msra.mxu0 0
        %876 = vmatprep.subr.bf16.mxu0 0
        %877 = vmatpush1.bf16.msra.mxu0 0
        %878 = vmatprep.subr.bf16.mxu0 0
        %879 = vmatpush1.bf16.msra.mxu0 0
        %880 = vmatprep.subr.bf16.mxu0 0
        %881 = vmatpush1.bf16.msra.mxu0 0
        %882 = vmatprep.subr.bf16.mxu0 0
        %883 = vmatpush1.bf16.msra.mxu0 0
        %884 = vmatprep.subr.bf16.mxu0 0
        %885 = vmatpush1.bf16.msra.mxu0 0
        %886 = vmatprep.subr.bf16.mxu0 0
        %887 = vmatpush1.bf16.msra.mxu0 0
        %888 = vmatprep.subr.bf16.mxu0 0
        %889 = vmatpush1.bf16.msra.mxu0 0
        %890 = vmatprep.subr.bf16.mxu0 0
        %891 = vmatpush1.bf16.msra.mxu0 0
        %892 = vmatprep.mubr.bf16.mxu0 0
        %893 = vmatmul.mubr.bf16.gmra.mrb[0].mxu0 %v735
        %v894 = vpop.f32.mrb[0].mxu0
        %v895 = vadd.f32 %v854, %v894
        %v896 = vpop.f32.mrb[0].mxu0
        %v897 = vpop.f32.mrb[0].mxu0
        %v898 = vadd.f32 %v857, %v897
        %v899 = vpop.f32.mrb[0].mxu0
        %900 = vdwg.mxu0
        %v901 = vpack.c.bf16 %v898, %v895
        %v902 = vmul.bf16 %v901, 1056980736
        %v903 = vmul.bf16 %v901, 1027030327
        %v904 = vmul.bf16 %v903, %v901
        %v905 = vmul.bf16 %v904, %v901
        %v906 = vadd.bf16 %v901, %v905
        %v907 = vmul.bf16 %v906, 1061961548
        %v908 = vtanh.bf16.pop %v907
        %v909 = vadd.bf16 %v908, 1065369472
        %v910 = vmul.bf16 %v902, %v909
        %v911 = vld [vmem:[%s3] sm:$0xf]
        %v912 = vld [vmem:[%s3 + $0x4] sm:$0xf]
        %v913 = vld [vmem:[%s3 + $0x8] sm:$0xf]
        %v914 = vld [vmem:[%s3 + $0xc] sm:$0xf]
        %v915 = vld [vmem:[%s3 + $0x10] sm:$0xf]
        %v916 = vld [vmem:[%s3 + $0x14] sm:$0xf]
        %v917 = vld [vmem:[%s3 + $0x18] sm:$0xf]
        %v918 = vld [vmem:[%s3 + $0x1c] sm:$0xf]
        %v919 = vld [vmem:[%s3 + $0x20] sm:$0xf]
        %v920 = vld [vmem:[%s3 + $0x24] sm:$0xf]
        %v921 = vld [vmem:[%s3 + $0x28] sm:$0xf]
        %v922 = vld [vmem:[%s3 + $0x2c] sm:$0xf]
        %v923 = vld [vmem:[%s3 + $0x30] sm:$0xf]
        %v924 = vld [vmem:[%s3 + $0x34] sm:$0xf]
        %v925 = vld [vmem:[%s3 + $0x38] sm:$0xf]
        %v926 = vld [vmem:[%s3 + $0x3c] sm:$0xf]
        %v927 = vld [vmem:[%s4] sm:$0x1]
        %v929 = vlaneseq
        %v930 = vshrl.u32 %v929, 7
        %v931 = vsub.s32 0, %v930
        %v932 = vrot.slane %v927, %v931
        %v950 = vunpack.c.l.b16 %v911
        %v951 = vunpack.c.l.b16 %v912
        %v952 = vunpack.c.l.b16 %v913
        %v953 = vunpack.c.l.b16 %v914
        %v954 = vunpack.c.l.b16 %v915
        %v955 = vunpack.c.l.b16 %v916
        %v956 = vunpack.c.l.b16 %v917
        %v957 = vunpack.c.l.b16 %v918
        %v958 = vunpack.c.l.b16 %v919
        %v959 = vunpack.c.l.b16 %v920
        %v960 = vunpack.c.l.b16 %v921
        %v961 = vunpack.c.l.b16 %v922
        %v962 = vunpack.c.l.b16 %v923
        %v963 = vunpack.c.l.b16 %v924
        %v964 = vunpack.c.l.b16 %v925
        %v965 = vunpack.c.l.b16 %v926
        %v966 = vpack.c.b16 %v951, %v950
        %v967 = vpack.c.b16 %v953, %v952
        %v968 = vpack.c.b16 %v955, %v954
        %v969 = vpack.c.b16 %v957, %v956
        %v970 = vpack.c.b16 %v959, %v958
        %v971 = vpack.c.b16 %v961, %v960
        %v972 = vpack.c.b16 %v963, %v962
        %v973 = vpack.c.b16 %v965, %v964
        %982 = vmatprep.subr.bf16.mxu0 0
        %983 = vmatpush1.bf16.msra.mxu0 %v966
        %984 = vmatprep.subr.bf16.mxu0 0
        %985 = vmatpush1.bf16.msra.mxu0 %v967
        %986 = vmatprep.subr.bf16.mxu0 0
        %987 = vmatpush1.bf16.msra.mxu0 %v968
        %988 = vmatprep.subr.bf16.mxu0 0
        %989 = vmatpush1.bf16.msra.mxu0 %v969
        %990 = vmatprep.subr.bf16.mxu0 0
        %991 = vmatpush1.bf16.msra.mxu0 %v970
        %992 = vmatprep.subr.bf16.mxu0 0
        %993 = vmatpush1.bf16.msra.mxu0 %v971
        %994 = vmatprep.subr.bf16.mxu0 0
        %995 = vmatpush1.bf16.msra.mxu0 %v972
        %996 = vmatprep.subr.bf16.mxu0 0
        %997 = vmatpush1.bf16.msra.mxu0 %v973
        %998 = vmatprep.subr.bf16.mxu0 0
        %999 = vmatpush1.bf16.msra.mxu0 0
        %1000 = vmatprep.subr.bf16.mxu0 0
        %1001 = vmatpush1.bf16.msra.mxu0 0
        %1002 = vmatprep.subr.bf16.mxu0 0
        %1003 = vmatpush1.bf16.msra.mxu0 0
        %1004 = vmatprep.subr.bf16.mxu0 0
        %1005 = vmatpush1.bf16.msra.mxu0 0
        %1006 = vmatprep.subr.bf16.mxu0 0
        %1007 = vmatpush1.bf16.msra.mxu0 0
        %1008 = vmatprep.subr.bf16.mxu0 0
        %1009 = vmatpush1.bf16.msra.mxu0 0
        %1010 = vmatprep.subr.bf16.mxu0 0
        %1011 = vmatpush1.bf16.msra.mxu0 0
        %1012 = vmatprep.subr.bf16.mxu0 0
        %1013 = vmatpush1.bf16.msra.mxu0 0
        %1014 = vmatprep.mubr.bf16.mxu0 0
        %1015 = vmatmul.mubr.bf16.gmra.mrb[0].mxu0 %v910
        %v1016 = vpop.f32.mrb[0].mxu0
        %v1017 = vadd.f32 %v932, %v1016
        %v1018 = vpop.f32.mrb[0].mxu0
        %v1019 = vpop.f32.mrb[0].mxu0
        %v1020 = vadd.f32 %v932, %v1019
        %v1021 = vpop.f32.mrb[0].mxu0
        %1022 = vdwg.mxu0
        %v1023 = vpack.c.bf16 %v1020, %v1017
        %v1024 = vmul.bf16 %v1023, 1056980736
        %v1025 = vmul.bf16 %v1023, 1027030327
        %v1026 = vmul.bf16 %v1025, %v1023
        %v1027 = vmul.bf16 %v1026, %v1023
        %v1028 = vadd.bf16 %v1023, %v1027
        %v1029 = vmul.bf16 %v1028, 1061961548
        %v1030 = vtanh.bf16.pop %v1029
        %v1031 = vadd.bf16 %v1030, 1065369472
        %v1032 = vmul.bf16 %v1024, %v1031
        %v1033 = vld [vmem:[%s5] sm:$0xf]
        %v1034 = vld [vmem:[%s5 + $0x4] sm:$0xf]
        %v1035 = vld [vmem:[%s5 + $0x8] sm:$0xf]
        %v1036 = vld [vmem:[%s5 + $0xc] sm:$0xf]
        %v1037 = vld [vmem:[%s5 + $0x10] sm:$0xf]
        %v1038 = vld [vmem:[%s5 + $0x14] sm:$0xf]
        %v1039 = vld [vmem:[%s5 + $0x18] sm:$0xf]
        %v1040 = vld [vmem:[%s5 + $0x1c] sm:$0xf]
        %v1041 = vld [vmem:[%s5 + $0x20] sm:$0xf]
        %v1042 = vld [vmem:[%s5 + $0x24] sm:$0xf]
        %v1043 = vld [vmem:[%s5 + $0x28] sm:$0xf]
        %v1044 = vld [vmem:[%s5 + $0x2c] sm:$0xf]
        %v1045 = vld [vmem:[%s5 + $0x30] sm:$0xf]
        %v1046 = vld [vmem:[%s5 + $0x34] sm:$0xf]
        %v1047 = vld [vmem:[%s5 + $0x38] sm:$0xf]
        %v1048 = vld [vmem:[%s5 + $0x3c] sm:$0xf]
        %v1049 = vld [vmem:[%s6] sm:$0x1]
        %v1051 = vlaneseq
        %v1052 = vshrl.u32 %v1051, 7
        %v1053 = vsub.s32 0, %v1052
        %v1054 = vrot.slane %v1049, %v1053
        %v1072 = vunpack.c.l.b16 %v1033
        %v1073 = vunpack.c.l.b16 %v1034
        %v1074 = vunpack.c.l.b16 %v1035
        %v1075 = vunpack.c.l.b16 %v1036
        %v1076 = vunpack.c.l.b16 %v1037
        %v1077 = vunpack.c.l.b16 %v1038
        %v1078 = vunpack.c.l.b16 %v1039
        %v1079 = vunpack.c.l.b16 %v1040
        %v1080 = vunpack.c.l.b16 %v1041
        %v1081 = vunpack.c.l.b16 %v1042
        %v1082 = vunpack.c.l.b16 %v1043
        %v1083 = vunpack.c.l.b16 %v1044
        %v1084 = vunpack.c.l.b16 %v1045
        %v1085 = vunpack.c.l.b16 %v1046
        %v1086 = vunpack.c.l.b16 %v1047
        %v1087 = vunpack.c.l.b16 %v1048
        %v1088 = vpack.c.b16 %v1073, %v1072
        %v1089 = vpack.c.b16 %v1075, %v1074
        %v1090 = vpack.c.b16 %v1077, %v1076
        %v1091 = vpack.c.b16 %v1079, %v1078
        %v1092 = vpack.c.b16 %v1081, %v1080
        %v1093 = vpack.c.b16 %v1083, %v1082
        %v1094 = vpack.c.b16 %v1085, %v1084
        %v1095 = vpack.c.b16 %v1087, %v1086
        %1104 = vmatprep.subr.bf16.mxu0 0
        %1105 = vmatpush1.bf16.msra.mxu0 %v1088
        %1106 = vmatprep.subr.bf16.mxu0 0
        %1107 = vmatpush1.bf16.msra.mxu0 %v1089
        %1108 = vmatprep.subr.bf16.mxu0 0
        %1109 = vmatpush1.bf16.msra.mxu0 %v1090
        %1110 = vmatprep.subr.bf16.mxu0 0
        %1111 = vmatpush1.bf16.msra.mxu0 %v1091
        %1112 = vmatprep.subr.bf16.mxu0 0
        %1113 = vmatpush1.bf16.msra.mxu0 %v1092
        %1114 = vmatprep.subr.bf16.mxu0 0
        %1115 = vmatpush1.bf16.msra.mxu0 %v1093
        %1116 = vmatprep.subr.bf16.mxu0 0
        %1117 = vmatpush1.bf16.msra.mxu0 %v1094
        %1118 = vmatprep.subr.bf16.mxu0 0
        %1119 = vmatpush1.bf16.msra.mxu0 %v1095
        %1120 = vmatprep.subr.bf16.mxu0 0
        %1121 = vmatpush1.bf16.msra.mxu0 0
        %1122 = vmatprep.subr.bf16.mxu0 0
        %1123 = vmatpush1.bf16.msra.mxu0 0
        %1124 = vmatprep.subr.bf16.mxu0 0
        %1125 = vmatpush1.bf16.msra.mxu0 0
        %1126 = vmatprep.subr.bf16.mxu0 0
        %1127 = vmatpush1.bf16.msra.mxu0 0
        %1128 = vmatprep.subr.bf16.mxu0 0
        %1129 = vmatpush1.bf16.msra.mxu0 0
        %1130 = vmatprep.subr.bf16.mxu0 0
        %1131 = vmatpush1.bf16.msra.mxu0 0
        %1132 = vmatprep.subr.bf16.mxu0 0
        %1133 = vmatpush1.bf16.msra.mxu0 0
        %1134 = vmatprep.subr.bf16.mxu0 0
        %1135 = vmatpush1.bf16.msra.mxu0 0
        %1136 = vmatprep.mubr.bf16.mxu0 0
        %1137 = vmatmul.mubr.bf16.gmra.mrb[0].mxu0 %v1032
        %v1138 = vpop.f32.mrb[0].mxu0
        %v1139 = vadd.f32 %v1054, %v1138
        %v1140 = vpop.f32.mrb[0].mxu0
        %v1141 = vpop.f32.mrb[0].mxu0
        %v1142 = vadd.f32 %v1054, %v1141
        %v1143 = vpop.f32.mrb[0].mxu0
        %1144 = vdwg.mxu0
        %v1145 = vpack.c.bf16 %v1142, %v1139
        %v1147 = vunpack.c.l.b16 %v1145
        %v1148 = vunpack.c.h.b16 %v1145
        %v1149 = vpack.c.b16 %v1147, %v1147
        %v1150 = vpack.c.b16 %v1148, %v1148
        %1153 = vst [vmem:[%s285] sm:$0xf] %v1149
        %1154 = vst [vmem:[%s285 + $0x4] sm:$0xf] %v1150
        %s1155 = sand.u32 %s178, 1
        %s1156 = sand.u32 %s178, 1
        %s1157 = smul.addr %s1156, 8
        %s1158 = scalar_lea.vmem [#allocation2], %s1157
        // Predicated region
        $region49: #{net_forward.1} parent=47 // pred_check
          %p1159 = pneg %p188
        $region50: #{net_forward.1} parent=47 // pred_check_branch
          %1161 = sbr.rel (%p1159) target = $region52
        $region51: #{net_forward.1} parent=47 // pred_region
          %s1162 = smul.u32 2, %s18
          %s1163 = ssub.s32 5, %s1162
          %p1164 = scmp.lt.s32.totalorder %s1163, 2
          %s1165 = scalar_select %p1164, %s1163, 2
          %s1166 = smul.u32 64, %s1165
          %p1167 = scmp.ne.s32.totalorder 0, %s1166
          %s1168 = smul.addr %s1162, 4
          %s1169 = scalar_lea.vmem %s7, %s1168
          // Predicated region
          $region53: #{net_forward.1} parent=51 // pred_check
            %p1170 = pneg %p1167
          $region54: #{net_forward.1} parent=51 // pred_check_branch
            %1172 = sbr.rel (%p1170) target = $region56
          $region55: #{net_forward.1} parent=51 // pred_region
            // Predicated region
            $region57: #{net_forward.1} parent=55 // pred_check
              _
            $region58: #{net_forward.1} parent=55 // pred_check_branch
              %1174 = sbr.rel target = $region60
            $region59: #{net_forward.1} parent=55 // pred_region
              // Predicated region
              $region79: #{net_forward.1} parent=59 // pred_check
                _
              $region80: #{net_forward.1} parent=59 // pred_check_branch
                %1225 = sbr.rel (0) target = $region82
              $region81: #{net_forward.1} parent=59 // pred_region
                %s1227 = sshrl.u32 %s1165, 1
                // While loop
                $region83: #{net_forward.1} parent=81 // loop_pre_header
                  _
                $region84: #{net_forward.1} parent=81 // loop_header
                  %s1229 = sphi 0, %s1231
                  %p1230 = scmp.ge.s32.totalorder %s1229, %s1227
                  %s1234 = sphi 0, %s1243
                  %s1235 = sphi %s1158, %s1246
                  %s1236 = sphi %s1169, %s1247
                $region85: #{net_forward.1} parent=81 // loop_header_branch
                  %1233 = sbr.rel (%p1230) target = $region89
                $region86: #{net_forward.1} parent=81 // loop_body
                  %v1237 = vld [vmem:[%s1235] sm:$0xf]
                  %1238 = vst [vmem:[%s1236] sm:$0xf] %v1237
                  %v1239 = vld [vmem:[%s1235 + $0x4] sm:$0xf]
                  %1240 = vst [vmem:[%s1236 + $0x4] sm:$0xf] %v1239
                  %s1241 = sadd.s32 1, %s1234
                  %p1242 = scmp.ge.s32.totalorder %s1241, %s1227
                  %s1243 = scalar_select %p1242, 0, %s1241
                  %s1244 = smul.u32 %s1243, 8
                  %s1245 = smul.u32 %s1243, 8
                  %s1246 = scalar_lea.vmem %s1158, %s1244 [#allocation2]
                  %s1247 = scalar_lea.vmem %s1169, %s1245
                $region87: #{net_forward.1} parent=81 // loop_footer
                  %s1231 = sadd.s32 %s1229, 1
                $region88: #{net_forward.1} parent=81 // loop_footer_branch
                  %1228 = sbr.rel target = $region84
                $region89: #{net_forward.1} parent=81 // loop_exit
                  _
                %s1248 = sshrl.u32 %s1165, 1
                %s1249 = sand.u32 %s1165, 1
                %s1250 = smul.u32 %s1248, 2
                %s1251 = smul.u32 4, %s1250
                %s1252 = scalar_lea.vmem %s1158, %s1251 [#allocation2]
                %s1253 = smul.u32 4, %s1250
                %s1254 = scalar_lea.vmem %s1169, %s1253
                // While loop
                $region90: #{net_forward.1} parent=81 // loop_pre_header
                  _
                $region91: #{net_forward.1} parent=81 // loop_header
                  %s1256 = sphi 0, %s1258
                  %p1257 = scmp.ge.s32.totalorder %s1256, %s1249
                  %s1261 = sphi 0, %s1268
                  %s1262 = sphi %s1252, %s1271
                  %s1263 = sphi %s1254, %s1272
                $region92: #{net_forward.1} parent=81 // loop_header_branch
                  %1260 = sbr.rel (%p1257) target = $region96
                $region93: #{net_forward.1} parent=81 // loop_body
                  %v1264 = vld [vmem:[%s1262] sm:$0xf]
                  %1265 = vst [vmem:[%s1263] sm:$0xf] %v1264
                  %s1266 = sadd.s32 1, %s1261
                  %p1267 = scmp.ge.s32.totalorder %s1266, %s1249
                  %s1268 = scalar_select %p1267, 0, %s1266
                  %s1269 = smul.u32 %s1268, 4
                  %s1270 = smul.u32 %s1268, 4
                  %s1271 = scalar_lea.vmem %s1252, %s1269 [#allocation2]
                  %s1272 = scalar_lea.vmem %s1254, %s1270
                $region94: #{net_forward.1} parent=81 // loop_footer
                  %s1258 = sadd.s32 %s1256, 1
                $region95: #{net_forward.1} parent=81 // loop_footer_branch
                  %1255 = sbr.rel target = $region91
                $region96: #{net_forward.1} parent=81 // loop_exit
                  _
              $region82: #{net_forward.1} parent=59 // pred_fallthru
                _
            $region60: #{net_forward.1} parent=55 // pred_fallthru
              _
            // Predicated region
            $region61: #{net_forward.1} parent=55 // pred_check
              _
            $region62: #{net_forward.1} parent=55 // pred_check_branch
              %1176 = sbr.rel (0) target = $region64
            $region63: #{net_forward.1} parent=55 // pred_region
              %s1178 = sshrl.u32 %s1165, 1
              // While loop
              $region65: #{net_forward.1} parent=63 // loop_pre_header
                _
              $region66: #{net_forward.1} parent=63 // loop_header
                %s1180 = sphi 0, %s1182
                %p1181 = scmp.ge.s32.totalorder %s1180, %s1178
                %s1185 = sphi 0, %s1194
                %s1186 = sphi %s1158, %s1197
                %s1187 = sphi %s1169, %s1198
              $region67: #{net_forward.1} parent=63 // loop_header_branch
                %1184 = sbr.rel (%p1181) target = $region71
              $region68: #{net_forward.1} parent=63 // loop_body
                %v1188 = vld [vmem:[%s1186] sm:$0xf]
                %1189 = vst [vmem:[%s1187] sm:$0xf] %v1188
                %v1190 = vld [vmem:[%s1186 + $0x4] sm:$0xf]
                %1191 = vst [vmem:[%s1187 + $0x4] sm:$0xf] %v1190
                %s1192 = sadd.s32 1, %s1185
                %p1193 = scmp.ge.s32.totalorder %s1192, %s1178
                %s1194 = scalar_select %p1193, 0, %s1192
                %s1195 = smul.u32 %s1194, 8
                %s1196 = smul.u32 %s1194, 8
                %s1197 = scalar_lea.vmem %s1158, %s1195 [#allocation2]
                %s1198 = scalar_lea.vmem %s1169, %s1196
              $region69: #{net_forward.1} parent=63 // loop_footer
                %s1182 = sadd.s32 %s1180, 1
              $region70: #{net_forward.1} parent=63 // loop_footer_branch
                %1179 = sbr.rel target = $region66
              $region71: #{net_forward.1} parent=63 // loop_exit
                _
              %s1199 = sshrl.u32 %s1165, 1
              %s1200 = sand.u32 %s1165, 1
              %s1201 = smul.u32 %s1199, 2
              %s1202 = smul.u32 4, %s1201
              %s1203 = scalar_lea.vmem %s1158, %s1202 [#allocation2]
              %s1204 = smul.u32 4, %s1201
              %s1205 = scalar_lea.vmem %s1169, %s1204
              // While loop
              $region72: #{net_forward.1} parent=63 // loop_pre_header
                _
              $region73: #{net_forward.1} parent=63 // loop_header
                %s1207 = sphi 0, %s1209
                %p1208 = scmp.ge.s32.totalorder %s1207, %s1200
                %s1212 = sphi 0, %s1219
                %s1213 = sphi %s1203, %s1222
                %s1214 = sphi %s1205, %s1223
              $region74: #{net_forward.1} parent=63 // loop_header_branch
                %1211 = sbr.rel (%p1208) target = $region78
              $region75: #{net_forward.1} parent=63 // loop_body
                %v1215 = vld [vmem:[%s1213] sm:$0xf]
                %1216 = vst [vmem:[%s1214] sm:$0xf] %v1215
                %s1217 = sadd.s32 1, %s1212
                %p1218 = scmp.ge.s32.totalorder %s1217, %s1200
                %s1219 = scalar_select %p1218, 0, %s1217
                %s1220 = smul.u32 %s1219, 4
                %s1221 = smul.u32 %s1219, 4
                %s1222 = scalar_lea.vmem %s1203, %s1220 [#allocation2]
                %s1223 = scalar_lea.vmem %s1205, %s1221
              $region76: #{net_forward.1} parent=63 // loop_footer
                %s1209 = sadd.s32 %s1207, 1
              $region77: #{net_forward.1} parent=63 // loop_footer_branch
                %1206 = sbr.rel target = $region73
              $region78: #{net_forward.1} parent=63 // loop_exit
                _
            $region64: #{net_forward.1} parent=55 // pred_fallthru
              _
          $region56: #{net_forward.1} parent=51 // pred_fallthru
            _
          %1273 = vnop
        $region52: #{net_forward.1} parent=47 // pred_fallthru
          _
      $region48: #{net_forward.1} parent=5 // pred_fallthru
        _
      %p1274 = scmp.le.s32.totalorder 2, %s13
      // Predicated region
      $region97: #{net_forward.1} parent=5 // pred_check
        %p1275 = pneg %p1274
      $region98: #{net_forward.1} parent=5 // pred_check_branch
        %1277 = sbr.rel (%p1275) target = $region100
      $region99: #{net_forward.1} parent=5 // pred_region
        %s1278 = ssub.s32 %s13, 2
        // Predicated region
        $region101: #{net_forward.1} parent=99 // pred_check
          %p1279 = pneg %p194
        $region102: #{net_forward.1} parent=99 // pred_check_branch
          %1281 = sbr.rel (%p1279) target = $region104
        $region103: #{net_forward.1} parent=99 // pred_region
          %s1282 = sand.u32 %s179, 1
          %s1283 = sand.u32 %s179, 1
          %s1284 = smul.addr %s1283, 8
          %s1285 = scalar_lea.vmem [#allocation2], %s1284
        $region104: #{net_forward.1} parent=99 // pred_fallthru
          _
      $region100: #{net_forward.1} parent=5 // pred_fallthru
        _
    $region6: #{net_forward.1} parent=1 // loop_footer
      %s17 = sadd.s32 1, %s13
    $region7: #{net_forward.1} parent=1 // loop_footer_branch
      %12 = sbr.rel target = $region3
    $region8: #{net_forward.1} parent=1 // loop_exit
      _

</llo_original>
